<compile_context>
chip_gen: v5e
topology: v5e:2x2
jax: 0.10.0
libtpu: 0.0.40
codegen_flags: <defaults>
</compile_context>

<pallas_src>
import functools

import jax
import jax.numpy as jnp
from jax.experimental import pallas as pl
from jax.experimental.pallas import tpu as pltpu


# ---------------------------------------------------------------------------
# Pallas kernel: one TB-sized batch tile per grid step, full forward fused.
# ---------------------------------------------------------------------------
def _cnn_kernel(max_fs, S,
                x_ref, w_ref, bconv_ref, mask_ref, wfc_ref, bfc_ref,
                out_ref):
    rows, _ = x_ref.shape                     # rows = TB * S (flattened batch*time)
    NF4 = w_ref.shape[2]
    TB = rows // S

    x = x_ref[...]                            # bf16 [rows, E], MXU LHS

    # Fused Conv1d taps with fc_input folded in: per tap, one full-length
    # [rows, E] @ [E, 4F] matmul.  Tap k = 0 initializes the accumulator and
    # carries the folded bias; taps k > 0 are shifted back k time steps by
    # rolling the f32 result along the row axis (XLU slot, 32-bit safe).
    acc = jnp.dot(x, w_ref[0], preferred_element_type=jnp.float32) + bconv_ref[...]
    for k in range(1, max_fs):                # static, fully unrolled
        fk = jnp.dot(x, w_ref[k], preferred_element_type=jnp.float32)
        acc = acc + pltpu.roll(fk, rows - k, axis=0)

    conv = jnp.maximum(acc, 0.0)              # ReLU (guarantees >= 0 for masking)

    # Zero out invalid / wrapped time positions with the precomputed 0/1 mask,
    # then max-pool over time.  (S is a multiple of 8, so the reshape is a
    # free relayout.)
    conv = conv.reshape(TB, S, NF4) * mask_ref[...]
    pooled = jnp.max(conv, axis=1)            # [TB, 4F]

    # dropout: identity at inference time.  Final Linear; out_dim is
    # zero-padded to a full 128-lane block so the store is lane-dense.
    out = jnp.dot(pooled.astype(jnp.bfloat16), wfc_ref[...],
                  preferred_element_type=jnp.float32) + bfc_ref[...]
    out_ref[...] = out.astype(out_ref.dtype)


# ---------------------------------------------------------------------------
# Wrapper: parameter folding / re-layout + pallas_call plumbing.
# ---------------------------------------------------------------------------
def cnn_forward(x, params, filter_sizes, batch_tile=None):
    B, S, E = x.shape
    w1, b1 = params["fc_input"]               # torch layout: [E, E], [E]
    convs = params["convs"]                   # list of (wc [F, E, fs], bc [F])
    wfc, bfc = params["fc"]                   # torch layout: [OUT, 4F], [OUT]
    F = convs[0][0].shape[0]
    NF4 = len(filter_sizes) * F
    out_dim = wfc.shape[0]
    max_fs = max(filter_sizes)
    assert S >= max_fs, "sequence must be at least as long as the largest filter"

    # ---- batch tile selection ---------------------------------------------
    if batch_tile is not None:
        TB = batch_tile
    else:
        # Big tiles amortize the ~0.35 us per-grid-step pipeline overhead.
        TB = min(B, 512)
        # Keep >= 2 grid steps when possible so the "parallel" batch axis can
        # shard over both TensorCores on v7x (no effect on v5e/v6e).
        if B > 8 and pl.cdiv(B, TB) < 2:
            TB = max(8, ((B + 1) // 2 + 7) // 8 * 8)
    if TB < B:
        TB = ((TB + 7) // 8) * 8               # respect the (8,128) block rule
    n_steps = pl.cdiv(B, TB)
    Bp = n_steps * TB
    if Bp != B:
        x = jnp.pad(x, ((0, Bp - B), (0, 0), (0, 0)))

    rows = TB * S
    OUTP = ((out_dim + 127) // 128) * 128      # lane-dense padded output width

    # ---- parameter folding / re-layout (once, outside the kernel) ---------
    x2d = x.reshape(Bp * S, E).astype(jnp.bfloat16)

    # Fuse the 4 conv branches along the filter axis; zero-pad missing taps.
    w_fused = jnp.zeros((max_fs, E, NF4), jnp.float32)
    for i, ((wc, _), fs) in enumerate(zip(convs, filter_sizes)):
        wk = jnp.transpose(wc, (2, 1, 0)).astype(jnp.float32)     # [fs, E, F]
        w_fused = w_fused.at[:fs, :, i * F:(i + 1) * F].set(wk)

    # Fold fc_input (emb = x @ W1^T + b1) into the conv taps:
    #   w_comb[k] = W1^T @ w_fused[k]                [E, 4F]
    #   b_comb    = sum_k b1 @ w_fused[k] + b_conv   [4F]
    w1_t = jnp.transpose(w1).astype(jnp.float32)
    w_comb = jnp.einsum("ij,kjn->kin", w1_t, w_fused).astype(jnp.bfloat16)
    b_conv = jnp.concatenate([bc for _, bc in convs]).astype(jnp.float32)
    b_comb = (jnp.einsum("j,kjn->n", b1.astype(jnp.float32), w_fused)
              + b_conv).reshape(1, NF4).astype(jnp.float32)

    # Precomputed 0/1 valid-length mask (positions t >= S - fs_i + 1 invalid).
    vlen = jnp.repeat(jnp.asarray([S - fs + 1 for fs in filter_sizes], jnp.int32), F)
    mask = (jnp.arange(S, dtype=jnp.int32)[:, None] < vlen[None, :])
    mask = mask.astype(jnp.float32).reshape(1, S, NF4)

    # Final Linear, zero-padded to 128 output lanes for a lane-dense store.
    wfc_p = jnp.zeros((NF4, OUTP), jnp.float32).at[:, :out_dim].set(
        jnp.transpose(wfc).astype(jnp.float32)).astype(jnp.bfloat16)
    bfc_p = jnp.zeros((1, OUTP), jnp.float32).at[0, :out_dim].set(
        bfc.astype(jnp.float32))

    # ---- VMEM budgeting (v5e: 16 MiB scoped default; v7x: 64 MiB physical) -
    vmem_est = rows * (E * 2 * 2 + NF4 * 4 * 4) + TB * OUTP * 4 * 2 + (2 << 20)
    cp_kwargs = dict(dimension_semantics=("parallel",))
    if vmem_est > (12 << 20):
        cp_kwargs["vmem_limit_bytes"] = int(min(vmem_est * 2, 56 << 20))

    kernel = functools.partial(_cnn_kernel, max_fs, S)
    out = pl.pallas_call(
        kernel,
        out_shape=jax.ShapeDtypeStruct((Bp, OUTP), jnp.float32),
        grid_spec=pltpu.PrefetchScalarGridSpec(
            num_scalar_prefetch=0,
            grid=(n_steps,),
            in_specs=[
                pl.BlockSpec((rows, E), lambda b: (b, 0)),            # x (TB*S, E)
                pl.BlockSpec((max_fs, E, NF4), lambda b: (0, 0, 0)),  # folded conv W
                pl.BlockSpec((1, NF4), lambda b: (0, 0)),             # folded bias
                pl.BlockSpec((1, S, NF4), lambda b: (0, 0, 0)),       # 0/1 mask
                pl.BlockSpec((NF4, OUTP), lambda b: (0, 0)),          # Wfc^T padded
                pl.BlockSpec((1, OUTP), lambda b: (0, 0)),            # bfc padded
            ],
            out_specs=pl.BlockSpec((TB, OUTP), lambda b: (b, 0)),
        ),
        compiler_params=pltpu.CompilerParams(**cp_kwargs),
    )(x2d, w_comb, b_comb, mask, wfc_p, bfc_p)
    return out[:B, :out_dim]


# ---------------------------------------------------------------------------
# Pure-JAX reference (f32, for correctness check only).
# ---------------------------------------------------------------------------
def cnn_reference(x, params, filter_sizes):
    w1, b1 = params["fc_input"]
    emb = jnp.einsum("bse,oe->bso", x, w1) + b1               # nn.Linear
    emb = jnp.transpose(emb, (0, 2, 1))                       # [B, E, S] (NCW)
    pooled = []
    for (wc, bc), fs in zip(params["convs"], filter_sizes):
        B, E, S = emb.shape
        L = S - fs + 1
        out = jnp.zeros((B, wc.shape[0], L), jnp.float32)
        for k in range(fs):
            out = out + jnp.einsum("bcl,fc->bfl", emb[:, :, k:k + L], wc[:, :, k])
        out = jax.nn.relu(out + bc[None, :, None])
        pooled.append(jnp.max(out, axis=2))                   # max_pool over time
    cat = jnp.concatenate(pooled, axis=1)
    wfc, bfc = params["fc"]
    return cat @ wfc.T + bfc


# ---------------------------------------------------------------------------
# Deterministic parameter init + demo run.
# ---------------------------------------------------------------------------
def init_params(key, embedding_dim, n_filters, filter_sizes, output_dim):
    keys = jax.random.split(key, 4 + 2 * len(filter_sizes) + 2)
    it = iter(keys)
    scale = 0.1
    params = {
        "fc_input": (scale * jax.random.normal(next(it), (embedding_dim, embedding_dim)),
                     scale * jax.random.normal(next(it), (embedding_dim,))),
        "convs": [],
        "fc": None,
    }
    for fs in filter_sizes:
        wc = scale * jax.random.normal(next(it), (n_filters, embedding_dim, fs))
        bc = scale * jax.random.normal(next(it), (n_filters,))
        params["convs"].append((wc, bc))
    params["fc"] = (scale * jax.random.normal(next(it), (output_dim, len(filter_sizes) * n_filters)),
                    scale * jax.random.normal(next(it), (output_dim,)))
    return params


if __name__ == "__main__":
    B, S, E = 2, 16, 32
    n_filters = 8
    filter_sizes = (2, 3, 4, 5)
    output_dim = 2
    # dropout=0.5, pad_idx unused at inference.

    key = jax.random.PRNGKey(0)
    k_x, k_p = jax.random.split(key)
    x = jax.random.normal(k_x, (B, S, E), dtype=jnp.float32)
    params = init_params(k_p, E, n_filters, filter_sizes, output_dim)

    out = cnn_forward(x, params, filter_sizes)
    out = jax.block_until_ready(out)

    ref = cnn_reference(x, params, filter_sizes)
    assert out.shape == (B, output_dim), out.shape
    # bf16 MXU operands with f32 accumulation -> loosened tolerance vs f32 ref.
    assert jnp.allclose(out, ref, rtol=2e-2, atol=2e-2), (out, ref)

    print("KERNEL_OK")
</pallas_src>

<mosaic_0001>
module attributes {stable_mosaic.version = 11 : i64} {
  func.func @_cnn_kernel(%arg0: i32, %arg1: memref<32x32xbf16, #tpu.memory_space<vmem>>, %arg2: memref<5x32x32xbf16, #tpu.memory_space<vmem>>, %arg3: memref<1x32xf32, #tpu.memory_space<vmem>>, %arg4: memref<1x16x32xf32, #tpu.memory_space<vmem>>, %arg5: memref<32x128xbf16, #tpu.memory_space<vmem>>, %arg6: memref<1x128xf32, #tpu.memory_space<vmem>>, %arg7: memref<2x128xf32, #tpu.memory_space<vmem>>) attributes {dimension_semantics = [#tpu.dimension_semantics<parallel>], iteration_bounds = array<i64: 1>, scalar_prefetch = 0 : i64, scratch_operands = 0 : i64, tpu.core_type = #tpu.core_type<tc>, window_params = [{transform_indices = @transform_0, window_bounds = array<i64: 32, 32>}, {pipeline_mode = #tpu.pipeline_mode<synchronous>, transform_indices = @transform_1, window_bounds = array<i64: 5, 32, 32>}, {pipeline_mode = #tpu.pipeline_mode<synchronous>, transform_indices = @transform_2, window_bounds = array<i64: 1, 32>}, {pipeline_mode = #tpu.pipeline_mode<synchronous>, transform_indices = @transform_3, window_bounds = array<i64: 1, 16, 32>}, {pipeline_mode = #tpu.pipeline_mode<synchronous>, transform_indices = @transform_4, window_bounds = array<i64: 32, 128>}, {pipeline_mode = #tpu.pipeline_mode<synchronous>, transform_indices = @transform_5, window_bounds = array<i64: 1, 128>}, {transform_indices = @transform_6, window_bounds = array<i64: 2, 128>}]} {
    %c0 = arith.constant 0 : index
    %c0_0 = arith.constant 0 : index
    %0 = vector.load %arg1[%c0, %c0_0] : memref<32x32xbf16, #tpu.memory_space<vmem>>, vector<32x32xbf16>
    %c0_1 = arith.constant 0 : index
    %c0_2 = arith.constant 0 : index
    %c0_3 = arith.constant 0 : index
    %1 = vector.load %arg2[%c0_1, %c0_2, %c0_3] : memref<5x32x32xbf16, #tpu.memory_space<vmem>>, vector<1x32x32xbf16>
    %2 = vector.shape_cast %1 : vector<1x32x32xbf16> to vector<32x32xbf16>
    %cst = arith.constant dense<0.000000e+00> : vector<32x32xf32>
    %3 = tpu.matmul %0, %2, %cst {dimension_numbers = #tpu.dot_dimension_numbers<[1], [0], [0], [1], [0, 0, 1, 1], [], []>} : vector<32x32xbf16>, vector<32x32xbf16>, vector<32x32xf32> -> vector<32x32xf32>
    %c0_4 = arith.constant 0 : index
    %c0_5 = arith.constant 0 : index
    %4 = vector.load %arg3[%c0_4, %c0_5] : memref<1x32xf32, #tpu.memory_space<vmem>>, vector<1x32xf32>
    %5 = vector.broadcast %4 : vector<1x32xf32> to vector<32x32xf32>
    %6 = arith.addf %3, %5 : vector<32x32xf32>
    %c1 = arith.constant 1 : index
    %c0_6 = arith.constant 0 : index
    %c0_7 = arith.constant 0 : index
    %7 = vector.load %arg2[%c1, %c0_6, %c0_7] : memref<5x32x32xbf16, #tpu.memory_space<vmem>>, vector<1x32x32xbf16>
    %8 = vector.shape_cast %7 : vector<1x32x32xbf16> to vector<32x32xbf16>
    %cst_8 = arith.constant dense<0.000000e+00> : vector<32x32xf32>
    %9 = tpu.matmul %0, %8, %cst_8 {dimension_numbers = #tpu.dot_dimension_numbers<[1], [0], [0], [1], [0, 0, 1, 1], [], []>} : vector<32x32xbf16>, vector<32x32xbf16>, vector<32x32xf32> -> vector<32x32xf32>
    %c31_i32 = arith.constant 31 : i32
    %10 = tpu.dynamic_rotate %9 by %c31_i32 dim 0 : vector<32x32xf32>, i32 -> vector<32x32xf32>
    %11 = arith.addf %6, %10 : vector<32x32xf32>
    %c2 = arith.constant 2 : index
    %c0_9 = arith.constant 0 : index
    %c0_10 = arith.constant 0 : index
    %12 = vector.load %arg2[%c2, %c0_9, %c0_10] : memref<5x32x32xbf16, #tpu.memory_space<vmem>>, vector<1x32x32xbf16>
    %13 = vector.shape_cast %12 : vector<1x32x32xbf16> to vector<32x32xbf16>
    %cst_11 = arith.constant dense<0.000000e+00> : vector<32x32xf32>
    %14 = tpu.matmul %0, %13, %cst_11 {dimension_numbers = #tpu.dot_dimension_numbers<[1], [0], [0], [1], [0, 0, 1, 1], [], []>} : vector<32x32xbf16>, vector<32x32xbf16>, vector<32x32xf32> -> vector<32x32xf32>
    %c30_i32 = arith.constant 30 : i32
    %15 = tpu.dynamic_rotate %14 by %c30_i32 dim 0 : vector<32x32xf32>, i32 -> vector<32x32xf32>
    %16 = arith.addf %11, %15 : vector<32x32xf32>
    %c3 = arith.constant 3 : index
    %c0_12 = arith.constant 0 : index
    %c0_13 = arith.constant 0 : index
    %17 = vector.load %arg2[%c3, %c0_12, %c0_13] : memref<5x32x32xbf16, #tpu.memory_space<vmem>>, vector<1x32x32xbf16>
    %18 = vector.shape_cast %17 : vector<1x32x32xbf16> to vector<32x32xbf16>
    %cst_14 = arith.constant dense<0.000000e+00> : vector<32x32xf32>
    %19 = tpu.matmul %0, %18, %cst_14 {dimension_numbers = #tpu.dot_dimension_numbers<[1], [0], [0], [1], [0, 0, 1, 1], [], []>} : vector<32x32xbf16>, vector<32x32xbf16>, vector<32x32xf32> -> vector<32x32xf32>
    %c29_i32 = arith.constant 29 : i32
    %20 = tpu.dynamic_rotate %19 by %c29_i32 dim 0 : vector<32x32xf32>, i32 -> vector<32x32xf32>
    %21 = arith.addf %16, %20 : vector<32x32xf32>
    %c4 = arith.constant 4 : index
    %c0_15 = arith.constant 0 : index
    %c0_16 = arith.constant 0 : index
    %22 = vector.load %arg2[%c4, %c0_15, %c0_16] : memref<5x32x32xbf16, #tpu.memory_space<vmem>>, vector<1x32x32xbf16>
    %23 = vector.shape_cast %22 : vector<1x32x32xbf16> to vector<32x32xbf16>
    %cst_17 = arith.constant dense<0.000000e+00> : vector<32x32xf32>
    %24 = tpu.matmul %0, %23, %cst_17 {dimension_numbers = #tpu.dot_dimension_numbers<[1], [0], [0], [1], [0, 0, 1, 1], [], []>} : vector<32x32xbf16>, vector<32x32xbf16>, vector<32x32xf32> -> vector<32x32xf32>
    %c28_i32 = arith.constant 28 : i32
    %25 = tpu.dynamic_rotate %24 by %c28_i32 dim 0 : vector<32x32xf32>, i32 -> vector<32x32xf32>
    %26 = arith.addf %21, %25 : vector<32x32xf32>
    %cst_18 = arith.constant 0.000000e+00 : f32
    %27 = vector.broadcast %cst_18 : f32 to vector<32x32xf32>
    %28 = arith.maximumf %26, %27 : vector<32x32xf32>
    %29 = vector.shape_cast %28 : vector<32x32xf32> to vector<2x16x32xf32>
    %c0_19 = arith.constant 0 : index
    %c0_20 = arith.constant 0 : index
    %c0_21 = arith.constant 0 : index
    %30 = vector.load %arg4[%c0_19, %c0_20, %c0_21] : memref<1x16x32xf32, #tpu.memory_space<vmem>>, vector<1x16x32xf32>
    %31 = vector.broadcast %30 : vector<1x16x32xf32> to vector<2x16x32xf32>
    %32 = arith.mulf %29, %31 : vector<2x16x32xf32>
    %cst_22 = arith.constant dense<0xFF800000> : vector<2x32xf32>
    %33 = vector.multi_reduction <maximumf>, %32, %cst_22 [1] : vector<2x16x32xf32> to vector<2x32xf32>
    %34 = arith.truncf %33 : vector<2x32xf32> to vector<2x32xbf16>
    %c0_23 = arith.constant 0 : index
    %c0_24 = arith.constant 0 : index
    %35 = vector.load %arg5[%c0_23, %c0_24] : memref<32x128xbf16, #tpu.memory_space<vmem>>, vector<32x128xbf16>
    %cst_25 = arith.constant dense<0.000000e+00> : vector<2x128xf32>
    %36 = tpu.matmul %34, %35, %cst_25 {dimension_numbers = #tpu.dot_dimension_numbers<[1], [0], [0], [1], [0, 0, 1, 1], [], []>} : vector<2x32xbf16>, vector<32x128xbf16>, vector<2x128xf32> -> vector<2x128xf32>
    %c0_26 = arith.constant 0 : index
    %c0_27 = arith.constant 0 : index
    %37 = vector.load %arg6[%c0_26, %c0_27] : memref<1x128xf32, #tpu.memory_space<vmem>>, vector<1x128xf32>
    %38 = vector.broadcast %37 : vector<1x128xf32> to vector<2x128xf32>
    %39 = arith.addf %36, %38 : vector<2x128xf32>
    %c0_28 = arith.constant 0 : index
    %c0_29 = arith.constant 0 : index
    %40 = vector.load %arg7[%c0_28, %c0_29] : memref<2x128xf32, #tpu.memory_space<vmem>>, vector<2x128xf32>
    tpu.vector_store %arg7[%c0_28, %c0_29], %39 {strides = array<i32>} : memref<2x128xf32, #tpu.memory_space<vmem>>, vector<2x128xf32>,
    return
  }
  func.func @transform_0(%arg0: i32) -> (i32, i32) {
    %c0_i32 = arith.constant 0 : i32
    %c0_i32_0 = arith.constant 0 : i32
    return %arg0, %c0_i32 : i32, i32
  }
  func.func @transform_1(%arg0: i32) -> (i32, i32, i32) {
    %c0_i32 = arith.constant 0 : i32
    %c0_i32_0 = arith.constant 0 : i32
    %c0_i32_1 = arith.constant 0 : i32
    %c0_i32_2 = arith.constant 0 : i32
    return %c0_i32, %c0_i32_0, %c0_i32_1 : i32, i32, i32
  }
  func.func @transform_2(%arg0: i32) -> (i32, i32) {
    %c0_i32 = arith.constant 0 : i32
    %c0_i32_0 = arith.constant 0 : i32
    %c0_i32_1 = arith.constant 0 : i32
    return %c0_i32, %c0_i32_0 : i32, i32
  }
  func.func @transform_3(%arg0: i32) -> (i32, i32, i32) {
    %c0_i32 = arith.constant 0 : i32
    %c0_i32_0 = arith.constant 0 : i32
    %c0_i32_1 = arith.constant 0 : i32
    %c0_i32_2 = arith.constant 0 : i32
    return %c0_i32, %c0_i32_0, %c0_i32_1 : i32, i32, i32
  }
  func.func @transform_4(%arg0: i32) -> (i32, i32) {
    %c0_i32 = arith.constant 0 : i32
    %c0_i32_0 = arith.constant 0 : i32
    %c0_i32_1 = arith.constant 0 : i32
    return %c0_i32, %c0_i32_0 : i32, i32
  }
  func.func @transform_5(%arg0: i32) -> (i32, i32) {
    %c0_i32 = arith.constant 0 : i32
    %c0_i32_0 = arith.constant 0 : i32
    %c0_i32_1 = arith.constant 0 : i32
    return %c0_i32, %c0_i32_0 : i32, i32
  }
  func.func @transform_6(%arg0: i32) -> (i32, i32) {
    %c0_i32 = arith.constant 0 : i32
    %c0_i32_0 = arith.constant 0 : i32
    return %arg0, %c0_i32 : i32, i32
  }
}

</mosaic_0001>

<llo_original>
// kernel: tpu_custom_call.1
$region0: #{tpu_custom_call.1}
  #allocation0 [shape = 'u32[]', space=smem, size = 0x4, offset = 0x4, fixed_abs, tag = 'smem constant byte address 0x4 - core index']
  #allocation1 [shape = 'u32[72,128]{1,0:T(1,128)}', space=vmem, size = 0x9000, scoped, tag = 'internal scratch']
  %s0 = inlined_call_operand.hbm [shape: bf16[32,32], index: 0, kind: input, shape index: {}]
  %s1 = inlined_call_operand.hbm [shape: bf16[5,32,32], index: 1, kind: input, shape index: {}]
  %s2 = inlined_call_operand.vmem [shape: f32[1,32], index: 2, kind: input, shape index: {}]
  %s3 = inlined_call_operand.hbm [shape: f32[1,16,32], index: 3, kind: input, shape index: {}]
  %s4 = inlined_call_operand.hbm [shape: bf16[32,128], index: 4, kind: input, shape index: {}]
  %s5 = inlined_call_operand.vmem [shape: f32[1,128], index: 5, kind: input, shape index: {}]
  %s6 = inlined_call_operand.hbm [shape: f32[2,128], index: 6, kind: output, shape index: {}]
  %s7 = sld [smem:[#allocation0]]
  $region50: #{tpu_custom_call.1} parent=0
    _
  %s9 = ssub.s32 1, %s7
  %s10 = scalar_select 0, %s9, %s7
  $region1: #{tpu_custom_call.1} parent=0
    #allocation2 [shape = 'u8[8192]{0}', space=vmem, size = 0x2000, scoped, tag = 'input window, operand 0, single buffered']
    #allocation3 [shape = 's32[1]{0}', space=sflag, size = 0x4, scoped, tag = 'scoped memory for tpu_custom_call.1']
    #allocation4 [shape = 's32[1]{0}', space=sflag, size = 0x4, scoped, tag = 'scoped memory for tpu_custom_call.1']
    #allocation5 [shape = 'u8[40960]{0}', space=vmem, size = 0xa000, scoped, tag = 'input window, operand 1, single buffered']
    #allocation6 [shape = 's32[1]{0}', space=sflag, size = 0x4, scoped, tag = 'scoped memory for tpu_custom_call.1']
    #allocation7 [shape = 'u8[8192]{0}', space=vmem, size = 0x2000, scoped, tag = 'input window, operand 3, single buffered']
    #allocation8 [shape = 'u8[8192]{0}', space=vmem, size = 0x2000, scoped, tag = 'input window, operand 4, single buffered']
    #allocation9 [shape = 's32[1]{0}', space=sflag, size = 0x4, scoped, tag = 'scoped memory for tpu_custom_call.1']
    #allocation10 [shape = 'u8[1024]{0}', space=vmem, size = 0x400, scoped, tag = 'output window, operand 0, single buffered']
    %11 = vsyncpa [#allocation3], 0
    %12 = vsyncpa [#allocation6], 0
    %13 = vsyncpa [#allocation9], 0
    %14 = vsyncpa [#allocation4], 0
    // Predicated region
    $region2: #{tpu_custom_call.1} parent=1 // pred_check
      _
    $region3: #{tpu_custom_call.1} parent=1 // pred_check_branch
      %16 = sbr.rel (0) target = $region5
    $region4: #{tpu_custom_call.1} parent=1 // pred_region
      %18 = vsyncadd [#allocation3], 0
      %s19 = sshll.u32 %s0, 4
      %s20 = int_to_ptr.hbm [resolvable:$true] %s19
      %s21 = sshll.u32 [#allocation2], 4
      %s22 = int_to_ptr.vmem [resolvable:$true] %s21
      %27 = dma.hbm_to_vmem [thread:$0]  %s20, 256, %s22, [#allocation3], 64, 64, 4
    $region5: #{tpu_custom_call.1} parent=1 // pred_fallthru
      _
    // Predicated region
    $region6: #{tpu_custom_call.1} parent=1 // pred_check
      _
    $region7: #{tpu_custom_call.1} parent=1 // pred_check_branch
      %29 = sbr.rel (0) target = $region9
    $region8: #{tpu_custom_call.1} parent=1 // pred_region
      %31 = vsyncadd [#allocation6], 0
      %s32 = sshll.u32 %s1, 4
      %s33 = int_to_ptr.hbm [resolvable:$true] %s32
      %s34 = sshll.u32 [#allocation5], 4
      %s35 = int_to_ptr.vmem [resolvable:$true] %s34
      %40 = dma.hbm_to_vmem [thread:$0]  %s33, 1280, %s35, [#allocation6], 64, 64, 4
    $region9: #{tpu_custom_call.1} parent=1 // pred_fallthru
      _
    // Predicated region
    $region10: #{tpu_custom_call.1} parent=1 // pred_check
      _
    $region11: #{tpu_custom_call.1} parent=1 // pred_check_branch
      %42 = sbr.rel (0) target = $region13
    $region12: #{tpu_custom_call.1} parent=1 // pred_region
      _
    $region13: #{tpu_custom_call.1} parent=1 // pred_fallthru
      _
    // Predicated region
    $region14: #{tpu_custom_call.1} parent=1 // pred_check
      _
    $region15: #{tpu_custom_call.1} parent=1 // pred_check_branch
      %44 = sbr.rel (0) target = $region17
    $region16: #{tpu_custom_call.1} parent=1 // pred_region
      %46 = vsyncadd [#allocation6], 0
      %s47 = sshll.u32 %s3, 4
      %s48 = int_to_ptr.hbm [resolvable:$true] %s47
      %s49 = sshll.u32 [#allocation7], 4
      %s50 = int_to_ptr.vmem [resolvable:$true] %s49
      %55 = dma.hbm_to_vmem [thread:$0]  %s48, 256, %s50, [#allocation6], 128, 128, 8
    $region17: #{tpu_custom_call.1} parent=1 // pred_fallthru
      _
    // Predicated region
    $region18: #{tpu_custom_call.1} parent=1 // pred_check
      _
    $region19: #{tpu_custom_call.1} parent=1 // pred_check_branch
      %57 = sbr.rel (0) target = $region21
    $region20: #{tpu_custom_call.1} parent=1 // pred_region
      %59 = vsyncadd [#allocation9], 0
      %s60 = sshll.u32 %s4, 4
      %s61 = int_to_ptr.hbm [resolvable:$true] %s60
      %s62 = sshll.u32 [#allocation8], 4
      %s63 = int_to_ptr.vmem [resolvable:$true] %s62
      %68 = dma.hbm_to_vmem [thread:$0]  %s61, 256, %s63, [#allocation9], 64, 64, 4
    $region21: #{tpu_custom_call.1} parent=1 // pred_fallthru
      _
    // Predicated region
    $region22: #{tpu_custom_call.1} parent=1 // pred_check
      _
    $region23: #{tpu_custom_call.1} parent=1 // pred_check_branch
      %70 = sbr.rel (0) target = $region25
    $region24: #{tpu_custom_call.1} parent=1 // pred_region
      _
    $region25: #{tpu_custom_call.1} parent=1 // pred_fallthru
      _
    // Predicated region
    $region26: #{tpu_custom_call.1} parent=1 // pred_check
      _
    $region27: #{tpu_custom_call.1} parent=1 // pred_check_branch
      %72 = sbr.rel (0) target = $region29
    $region28: #{tpu_custom_call.1} parent=1 // pred_region
      %74 = dma.done [#allocation3], 256
    $region29: #{tpu_custom_call.1} parent=1 // pred_fallthru
      _
    // Predicated region
    $region30: #{tpu_custom_call.1} parent=1 // pred_check
      _
    $region31: #{tpu_custom_call.1} parent=1 // pred_check_branch
      %76 = sbr.rel (0) target = $region33
    $region32: #{tpu_custom_call.1} parent=1 // pred_region
      %78 = dma.done [#allocation6], 1280
    $region33: #{tpu_custom_call.1} parent=1 // pred_fallthru
      _
    // Predicated region
    $region34: #{tpu_custom_call.1} parent=1 // pred_check
      _
    $region35: #{tpu_custom_call.1} parent=1 // pred_check_branch
      %80 = sbr.rel (0) target = $region37
    $region36: #{tpu_custom_call.1} parent=1 // pred_region
      %82 = dma.done [#allocation6], 256
    $region37: #{tpu_custom_call.1} parent=1 // pred_fallthru
      _
    // Predicated region
    $region38: #{tpu_custom_call.1} parent=1 // pred_check
      _
    $region39: #{tpu_custom_call.1} parent=1 // pred_check_branch
      %84 = sbr.rel (0) target = $region41
    $region40: #{tpu_custom_call.1} parent=1 // pred_region
      %86 = dma.done [#allocation9], 256
    $region41: #{tpu_custom_call.1} parent=1 // pred_fallthru
      _
    %v88 = vld [vmem:[#allocation2] sm:$0xf]
    %v89 = vld [vmem:[#allocation2 + $0x4] sm:$0xf]
    %v90 = vld [vmem:[#allocation2 + $0x8] sm:$0xf]
    %v91 = vld [vmem:[#allocation2 + $0xc] sm:$0xf]
    %v92 = vld [vmem:[#allocation5] sm:$0xf]
    %v93 = vld [vmem:[#allocation5 + $0x4] sm:$0xf]
    %v94 = vld [vmem:[#allocation5 + $0x8] sm:$0xf]
    %v95 = vld [vmem:[#allocation5 + $0xc] sm:$0xf]
    %v96 = vld [vmem:[%s2] sm:$0x1]
    %v98 = vperm.slane %v96, 0
    %v104 = vunpack.c.l.b16 %v88
    %v105 = vunpack.c.l.b16 %v89
    %v106 = vunpack.c.l.b16 %v90
    %v107 = vunpack.c.l.b16 %v91
    %v108 = vpack.c.b16 %v105, %v104
    %v109 = vpack.c.b16 %v107, %v106
    %v114 = vunpack.c.l.b16 %v92
    %v115 = vunpack.c.l.b16 %v93
    %v116 = vunpack.c.l.b16 %v94
    %v117 = vunpack.c.l.b16 %v95
    %v118 = vpack.c.b16 %v115, %v114
    %v119 = vpack.c.b16 %v117, %v116
    %vm122 = vcmask 261120
    %v124 = vsel %vm122, %v108, 0
    %v127 = vsel %vm122, %v109, 0
    %129 = vmatpush.bf16.msra.mxu0 0
    %130 = vmatpush.bf16.msra.mxu0 0
    %131 = vmatpush.bf16.msra.mxu0 0
    %132 = vmatpush.bf16.msra.mxu0 0
    %133 = vmatpush.bf16.msra.mxu0 0
    %134 = vmatpush.bf16.msra.mxu0 0
    %135 = vmatpush.bf16.msra.mxu0 %v119
    %136 = vmatpush.bf16.msra.mxu0 %v118
    %137 = vmatmul.bf16.gmra.mxu0 %v124
    %v138 = vpop.f32.mrf.mxu0
    %v139 = vadd.f32 %v98, %v138
    %v140 = vpop.f32.mrf.mxu0
    %v141 = vadd.f32 %v98, %v140
    %142 = vmatmul.bf16.gmra.mxu0 %v127
    %v143 = vpop.f32.mrf.mxu0
    %v144 = vadd.f32 %v98, %v143
    %v145 = vpop.f32.mrf.mxu0
    %v146 = vadd.f32 %v98, %v145
    %147 = vdwg.mxu0
    %s148 = scalar_lea.vmem [#allocation5], 16
    %v149 = vld [vmem:[%s148] sm:$0xf]
    %v150 = vld [vmem:[%s148 + $0x4] sm:$0xf]
    %v151 = vld [vmem:[%s148 + $0x8] sm:$0xf]
    %v152 = vld [vmem:[%s148 + $0xc] sm:$0xf]
    %v157 = vunpack.c.l.b16 %v149
    %v158 = vunpack.c.l.b16 %v150
    %v159 = vunpack.c.l.b16 %v151
    %v160 = vunpack.c.l.b16 %v152
    %v161 = vpack.c.b16 %v158, %v157
    %v162 = vpack.c.b16 %v160, %v159
    %165 = vmatpush.bf16.msra.mxu0 0
    %166 = vmatpush.bf16.msra.mxu0 0
    %167 = vmatpush.bf16.msra.mxu0 0
    %168 = vmatpush.bf16.msra.mxu0 0
    %169 = vmatpush.bf16.msra.mxu0 0
    %170 = vmatpush.bf16.msra.mxu0 0
    %171 = vmatpush.bf16.msra.mxu0 %v162
    %172 = vmatpush.bf16.msra.mxu0 %v161
    %173 = vmatmul.bf16.gmra.mxu0 %v124
    %v174 = vpop.f32.mrf.mxu0
    %v175 = vadd.f32 0.0, %v174
    %v176 = vpop.f32.mrf.mxu0
    %v177 = vadd.f32 0.0, %v176
    %178 = vmatmul.bf16.gmra.mxu0 %v127
    %v179 = vpop.f32.mrf.mxu0
    %v180 = vadd.f32 0.0, %v179
    %v181 = vpop.f32.mrf.mxu0
    %v182 = vadd.f32 0.0, %v181
    %183 = vdwg.mxu0
    %v184 = vrot.slane %v175, 1
    %v185 = vrot.slane %v177, 1
    %v186 = vrot.slane %v180, 1
    %v187 = vrot.slane %v182, 1
    %v188 = vlaneseq
    %v189 = vshrl.u32 %v188, 7
    %vm190 = vcmp.lt.s32.totalorder %v189, 7
    %v191 = vsel %vm190, %v186, %v187
    %v192 = vsel %vm190, %v185, %v186
    %v193 = vsel %vm190, %v184, %v185
    %v194 = vsel %vm190, %v187, %v184
    %v195 = vadd.f32 %v139, %v193
    %v196 = vadd.f32 %v141, %v192
    %v197 = vadd.f32 %v144, %v191
    %v198 = vadd.f32 %v146, %v194
    %s199 = scalar_lea.vmem [#allocation5], 32
    %v200 = vld [vmem:[%s199] sm:$0xf]
    %v201 = vld [vmem:[%s199 + $0x4] sm:$0xf]
    %v202 = vld [vmem:[%s199 + $0x8] sm:$0xf]
    %v203 = vld [vmem:[%s199 + $0xc] sm:$0xf]
    %v208 = vunpack.c.l.b16 %v200
    %v209 = vunpack.c.l.b16 %v201
    %v210 = vunpack.c.l.b16 %v202
    %v211 = vunpack.c.l.b16 %v203
    %v212 = vpack.c.b16 %v209, %v208
    %v213 = vpack.c.b16 %v211, %v210
    %216 = vmatpush.bf16.msra.mxu0 0
    %217 = vmatpush.bf16.msra.mxu0 0
    %218 = vmatpush.bf16.msra.mxu0 0
    %219 = vmatpush.bf16.msra.mxu0 0
    %220 = vmatpush.bf16.msra.mxu0 0
    %221 = vmatpush.bf16.msra.mxu0 0
    %222 = vmatpush.bf16.msra.mxu0 %v213
    %223 = vmatpush.bf16.msra.mxu0 %v212
    %224 = vmatmul.bf16.gmra.mxu0 %v124
    %v225 = vpop.f32.mrf.mxu0
    %v226 = vadd.f32 0.0, %v225
    %v227 = vpop.f32.mrf.mxu0
    %v228 = vadd.f32 0.0, %v227
    %229 = vmatmul.bf16.gmra.mxu0 %v127
    %v230 = vpop.f32.mrf.mxu0
    %v231 = vadd.f32 0.0, %v230
    %v232 = vpop.f32.mrf.mxu0
    %v233 = vadd.f32 0.0, %v232
    %234 = vdwg.mxu0
    %v235 = vrot.slane %v226, 2
    %v236 = vrot.slane %v228, 2
    %v237 = vrot.slane %v231, 2
    %v238 = vrot.slane %v233, 2
    %vm239 = vcmp.lt.s32.totalorder %v189, 6
    %v240 = vsel %vm239, %v237, %v238
    %v241 = vsel %vm239, %v236, %v237
    %v242 = vsel %vm239, %v235, %v236
    %v243 = vsel %vm239, %v238, %v235
    %v244 = vadd.f32 %v195, %v242
    %v245 = vadd.f32 %v196, %v241
    %v246 = vadd.f32 %v197, %v240
    %v247 = vadd.f32 %v198, %v243
    %s248 = scalar_lea.vmem [#allocation5], 48
    %v249 = vld [vmem:[%s248] sm:$0xf]
    %v250 = vld [vmem:[%s248 + $0x4] sm:$0xf]
    %v251 = vld [vmem:[%s248 + $0x8] sm:$0xf]
    %v252 = vld [vmem:[%s248 + $0xc] sm:$0xf]
    %v257 = vunpack.c.l.b16 %v249
    %v258 = vunpack.c.l.b16 %v250
    %v259 = vunpack.c.l.b16 %v251
    %v260 = vunpack.c.l.b16 %v252
    %v261 = vpack.c.b16 %v258, %v257
    %v262 = vpack.c.b16 %v260, %v259
    %265 = vmatpush.bf16.msra.mxu0 0
    %266 = vmatpush.bf16.msra.mxu0 0
    %267 = vmatpush.bf16.msra.mxu0 0
    %268 = vmatpush.bf16.msra.mxu0 0
    %269 = vmatpush.bf16.msra.mxu0 0
    %270 = vmatpush.bf16.msra.mxu0 0
    %271 = vmatpush.bf16.msra.mxu0 %v262
    %272 = vmatpush.bf16.msra.mxu0 %v261
    %273 = vmatmul.bf16.gmra.mxu0 %v124
    %v274 = vpop.f32.mrf.mxu0
    %v275 = vadd.f32 0.0, %v274
    %v276 = vpop.f32.mrf.mxu0
    %v277 = vadd.f32 0.0, %v276
    %278 = vmatmul.bf16.gmra.mxu0 %v127
    %v279 = vpop.f32.mrf.mxu0
    %v280 = vadd.f32 0.0, %v279
    %v281 = vpop.f32.mrf.mxu0
    %v282 = vadd.f32 0.0, %v281
    %283 = vdwg.mxu0
    %v284 = vrot.slane %v275, 3
    %v285 = vrot.slane %v277, 3
    %v286 = vrot.slane %v280, 3
    %v287 = vrot.slane %v282, 3
    %vm288 = vcmp.lt.s32.totalorder %v189, 5
    %v289 = vsel %vm288, %v286, %v287
    %v290 = vsel %vm288, %v285, %v286
    %v291 = vsel %vm288, %v284, %v285
    %v292 = vsel %vm288, %v287, %v284
    %v293 = vadd.f32 %v244, %v291
    %v294 = vadd.f32 %v245, %v290
    %v295 = vadd.f32 %v246, %v289
    %v296 = vadd.f32 %v247, %v292
    %s297 = scalar_lea.vmem [#allocation5], 64
    %v298 = vld [vmem:[%s297] sm:$0xf]
    %v299 = vld [vmem:[%s297 + $0x4] sm:$0xf]
    %v300 = vld [vmem:[%s297 + $0x8] sm:$0xf]
    %v301 = vld [vmem:[%s297 + $0xc] sm:$0xf]
    %v306 = vunpack.c.l.b16 %v298
    %v307 = vunpack.c.l.b16 %v299
    %v308 = vunpack.c.l.b16 %v300
    %v309 = vunpack.c.l.b16 %v301
    %v310 = vpack.c.b16 %v307, %v306
    %v311 = vpack.c.b16 %v309, %v308
    %314 = vmatpush.bf16.msra.mxu0 0
    %315 = vmatpush.bf16.msra.mxu0 0
    %316 = vmatpush.bf16.msra.mxu0 0
    %317 = vmatpush.bf16.msra.mxu0 0
    %318 = vmatpush.bf16.msra.mxu0 0
    %319 = vmatpush.bf16.msra.mxu0 0
    %320 = vmatpush.bf16.msra.mxu0 %v311
    %321 = vmatpush.bf16.msra.mxu0 %v310
    %322 = vmatmul.bf16.gmra.mxu0 %v124
    %v323 = vpop.f32.mrf.mxu0
    %v324 = vadd.f32 0.0, %v323
    %v325 = vpop.f32.mrf.mxu0
    %v326 = vadd.f32 0.0, %v325
    %327 = vmatmul.bf16.gmra.mxu0 %v127
    %v328 = vpop.f32.mrf.mxu0
    %v329 = vadd.f32 0.0, %v328
    %v330 = vpop.f32.mrf.mxu0
    %v331 = vadd.f32 0.0, %v330
    %332 = vdwg.mxu0
    %v333 = vrot.slane %v324, 4
    %v334 = vrot.slane %v326, 4
    %v335 = vrot.slane %v329, 4
    %v336 = vrot.slane %v331, 4
    %vm337 = vcmp.lt.s32.totalorder %v189, 4
    %v338 = vsel %vm337, %v335, %v336
    %v339 = vsel %vm337, %v334, %v335
    %v340 = vsel %vm337, %v333, %v334
    %v341 = vsel %vm337, %v336, %v333
    %v342 = vadd.f32 %v293, %v340
    %v343 = vadd.f32 %v294, %v339
    %v344 = vadd.f32 %v295, %v338
    %v345 = vadd.f32 %v296, %v341
    %v346 = vmax.f32 %v342, 0.0
    %v347 = vmax.f32 %v343, 0.0
    %v348 = vmax.f32 %v344, 0.0
    %v349 = vmax.f32 %v345, 0.0
    %v350 = vld [vmem:[#allocation7] sm:$0xff]
    %v351 = vld [vmem:[#allocation7 + $0x8] sm:$0xff]
    %v352 = vmul.f32 %v346, %v350
    %v353 = vmul.f32 %v347, %v351
    %v354 = vmul.f32 %v348, %v350
    %v355 = vmul.f32 %v349, %v351
    %v356 = vsel %vm122, %v352, -inf
    %v357 = vsel %vm122, %v353, -inf
    %v358 = vmax.f32 %v356, %v357
    %v359 = vrot.slane %v358, 4
    %v360 = vmax.f32 %v358, %v359
    %v361 = vrot.slane %v360, 2
    %v362 = vmax.f32 %v360, %v361
    %v363 = vrot.slane %v362, 1
    %v364 = vmax.f32 %v362, %v363
    %v365 = vsel %vm122, %v354, -inf
    %v366 = vsel %vm122, %v355, -inf
    %v367 = vmax.f32 %v365, %v366
    %v368 = vrot.slane %v367, 4
    %v369 = vmax.f32 %v367, %v368
    %v370 = vrot.slane %v369, 2
    %v371 = vmax.f32 %v369, %v370
    %v372 = vrot.slane %v371, 1
    %v373 = vmax.f32 %v371, %v372
    %v374 = vpack.c.bf16 %v364, %v364
    %v375 = vpack.c.bf16 %v373, %v373
    %v376 = vld [vmem:[#allocation8] sm:$0xf]
    %v377 = vld [vmem:[#allocation8 + $0x4] sm:$0xf]
    %v378 = vld [vmem:[#allocation8 + $0x8] sm:$0xf]
    %v379 = vld [vmem:[#allocation8 + $0xc] sm:$0xf]
    %v380 = vld [vmem:[%s5] sm:$0x1]
    %v382 = vperm.slane %v380, 0
    %v386 = vunpack.c.l.b16 %v374
    %v387 = vunpack.c.l.b16 %v375
    %vm388 = vcmask 1041409
    %v389 = vsel %vm388, %v387, %v386
    %v390 = vpack.c.b16 %v389, %v389
    %v395 = vunpack.c.l.b16 %v376
    %v396 = vunpack.c.l.b16 %v377
    %v397 = vunpack.c.l.b16 %v378
    %v398 = vunpack.c.l.b16 %v379
    %v399 = vpack.c.b16 %v396, %v395
    %v400 = vpack.c.b16 %v398, %v397
    %v404 = vsel %vm122, %v390, 0
    %406 = vmatpush.bf16.msra.mxu0 0
    %407 = vmatpush.bf16.msra.mxu0 0
    %408 = vmatpush.bf16.msra.mxu0 0
    %409 = vmatpush.bf16.msra.mxu0 0
    %410 = vmatpush.bf16.msra.mxu0 0
    %411 = vmatpush.bf16.msra.mxu0 0
    %412 = vmatpush.bf16.msra.mxu0 %v400
    %413 = vmatpush.bf16.msra.mxu0 %v399
    %414 = vmatmul.bf16.gmra.mxu0 %v404
    %v415 = vpop.f32.mrf.mxu0
    %v416 = vadd.f32 %v382, %v415
    %v417 = vpop.f32.mrf.mxu0
    %418 = vdwg.mxu0
    %419 = vst [vmem:[#allocation10] sm:$0x3] %v416
    // Predicated region
    $region42: #{tpu_custom_call.1} parent=1 // pred_check
      _
    $region43: #{tpu_custom_call.1} parent=1 // pred_check_branch
      %421 = sbr.rel (0) target = $region45
    $region44: #{tpu_custom_call.1} parent=1 // pred_region
      %423 = vsyncadd [#allocation4], 0
      %s425 = sshll.u32 [#allocation10], 4
      %s426 = int_to_ptr.vmem [resolvable:$true] %s425
      %s427 = sshll.u32 %s6, 4
      %s428 = int_to_ptr.hbm [resolvable:$true] %s427
      %430 = dma.vmem_to_hbm [thread:$0]  %s426, 32, %s428, [#allocation4]
    $region45: #{tpu_custom_call.1} parent=1 // pred_fallthru
      _
    // Predicated region
    $region46: #{tpu_custom_call.1} parent=1 // pred_check
      _
    $region47: #{tpu_custom_call.1} parent=1 // pred_check_branch
      %432 = sbr.rel (0) target = $region49
    $region48: #{tpu_custom_call.1} parent=1 // pred_region
      %434 = dma.done [#allocation4], 32
    $region49: #{tpu_custom_call.1} parent=1 // pred_fallthru
      _
    %435 = vsyncpa [#allocation3], 1
    %436 = vsyncpa [#allocation6], 1
    %437 = vsyncpa [#allocation9], 1
    %438 = vsyncpa [#allocation4], 1

</llo_original>
